<compile_context>
chip_gen: v5e
topology: v5e:2x2
jax: 0.10.0
libtpu: 0.0.40
codegen_flags: <defaults>
</compile_context>

<pallas_src>
import functools

import jax
import jax.numpy as jnp
from jax.experimental import pallas as pl
from jax.experimental.pallas import tpu as pltpu

_LANE = 128
_MAX_ROWS_TILE = 2048          # 2048*128*4B = 1 MiB per f32 input block


def _round_up(x, m):
    return ((x + m - 1) // m) * m


def _iou_kernel(pred_ref, true_ref, out_ref, inter_ref, sum_ref, *, smooth):
    r = pl.program_id(1)

    # New batch -> reset the per-batch partial-sum accumulators.
    @pl.when(r == 0)
    def _():
        inter_ref[...] = jnp.zeros_like(inter_ref)
        sum_ref[...] = jnp.zeros_like(sum_ref)

    p = pred_ref[...][0, 0]                        # (rows_tile, 128), native dtype
    t = true_ref[...][0, 0].astype(jnp.float32)    # (rows_tile, 128)

    # torch.clamp(pred, 1e-7, 1-1e-7) cannot change (pred > 0.5) -> omitted.
    pb = (p > 0.5).astype(jnp.float32)

    inter_ref[...] += jnp.sum(pb * t, keepdims=True)   # (1, 1)
    sum_ref[...] += jnp.sum(pb + t, keepdims=True)     # (1, 1)

    # Last spatial tile of this batch: finish IoU and write the output block.
    @pl.when(r == pl.num_programs(1) - 1)
    def _():
        inter = inter_ref[...]
        union = sum_ref[...] - inter
        acc = (inter + smooth) / (union + smooth)      # (1, 1)
        out_ref[...] = jnp.broadcast_to(acc, out_ref.shape)


def softmax_iou(pred, true, smooth=1.0):
    """pred: (bs, 2, H, W); true: (bs, H, W) binary mask -> scalar f32 mean IoU."""
    bs = pred.shape[0]
    n = 1
    for d in pred.shape[2:]:
        n *= d

    rows = pl.cdiv(n, _LANE)
    r8 = _round_up(rows, 8)
    rows_tile = min(_MAX_ROWS_TILE, r8)
    rows_pad = _round_up(r8, rows_tile)
    n_pad = rows_pad * _LANE
    num_tiles = rows_pad // rows_tile

    if n_pad == n:
        # Zero-copy path: keep pred in HBM untouched; the BlockSpec index_map
        # selects only the class-1 plane, so channel 0 is never DMA'd.
        pred_in = pred.reshape(bs, 2, rows_pad, _LANE)
        true_in = true.reshape(bs, 1, rows_pad, _LANE)
        pred_c = 1
    else:
        # Tail padding required: slice channel 1 first so the padded copy is
        # half-sized, pad with zeros (pb=0, t=0 -> contribute nothing).
        pred1 = pred.reshape(bs, 2, -1)[:, 1]
        pred1 = jnp.pad(pred1, ((0, 0), (0, n_pad - n)))
        pred_in = pred1.reshape(bs, 1, rows_pad, _LANE)
        true1 = jnp.pad(true.reshape(bs, -1).astype(true.dtype),
                        ((0, 0), (0, n_pad - n)))
        true_in = true1.reshape(bs, 1, rows_pad, _LANE)
        pred_c = 0

    kernel = functools.partial(_iou_kernel, smooth=float(smooth))

    out = pl.pallas_call(
        kernel,
        out_shape=jax.ShapeDtypeStruct((bs, 8, _LANE), jnp.float32),
        grid_spec=pltpu.PrefetchScalarGridSpec(
            num_scalar_prefetch=0,
            grid=(bs, num_tiles),
            in_specs=[
                pl.BlockSpec((1, 1, rows_tile, _LANE),
                             lambda b, r: (b, pred_c, r, 0)),
                pl.BlockSpec((1, 1, rows_tile, _LANE),
                             lambda b, r: (b, 0, r, 0)),
            ],
            out_specs=pl.BlockSpec((1, 8, _LANE), lambda b, r: (b, 0, 0)),
            scratch_shapes=[
                pltpu.VMEM((1, 1), jnp.float32),   # running intersection
                pltpu.VMEM((1, 1), jnp.float32),   # running sum(pb + t)
            ],
        ),
        compiler_params=pltpu.CompilerParams(
            dimension_semantics=("parallel", "arbitrary")),
    )(pred_in, true_in)

    # Tiny epilogue: mean over the per-batch IoU accuracies.
    return jnp.mean(out[:, 0, 0])


if __name__ == "__main__":
    key = jax.random.PRNGKey(0)
    k1, k2 = jax.random.split(key)

    bs, h, w = 2, 16, 16
    # pred: pseudo-probabilities over 2 classes (NCHW), true: binary mask.
    logits = jax.random.normal(k1, (bs, 2, h, w), dtype=jnp.float32)
    pred = jax.nn.softmax(logits, axis=1)
    true = (jax.random.uniform(k2, (bs, h, w)) > 0.5).astype(jnp.float32)

    result = softmax_iou(pred, true, smooth=1.0)
    jax.block_until_ready(result)

    # Pure-JAX reference of the original torch semantics.
    p = jnp.clip(pred, 1e-7, 1 - 1e-7).reshape(bs, 2, -1)
    t = true.reshape(bs, -1)
    pb = (p[:, 1] > 0.5).astype(jnp.float32)
    inter = jnp.sum(pb * t, axis=1)
    uni = jnp.sum(pb + t, axis=1) - inter
    ref = jnp.mean((inter + 1.0) / (uni + 1.0))
    assert jnp.allclose(result, ref, rtol=1e-5, atol=1e-6), (result, ref)

    print("KERNEL_OK")
</pallas_src>

<mosaic_0001>
module attributes {stable_mosaic.version = 11 : i64} {
  func.func @_iou_kernel(%arg0: i32, %arg1: i32, %arg2: memref<1x1x8x128xf32, #tpu.memory_space<vmem>>, %arg3: memref<1x1x8x128xf32, #tpu.memory_space<vmem>>, %arg4: memref<1x8x128xf32, #tpu.memory_space<vmem>>, %arg5: memref<1x1xf32, #tpu.memory_space<vmem>>, %arg6: memref<1x1xf32, #tpu.memory_space<vmem>>) attributes {dimension_semantics = [#tpu.dimension_semantics<parallel>, #tpu.dimension_semantics<arbitrary>], iteration_bounds = array<i64: 2, 1>, scalar_prefetch = 0 : i64, scratch_operands = 2 : i64, tpu.core_type = #tpu.core_type<tc>, window_params = [{transform_indices = @transform_0, window_bounds = array<i64: 1, 1, 8, 128>}, {transform_indices = @transform_1, window_bounds = array<i64: 1, 1, 8, 128>}, {transform_indices = @transform_2, window_bounds = array<i64: 1, 8, 128>}]} {
    %c0_i32 = arith.constant 0 : i32
    %0 = arith.cmpi eq, %arg1, %c0_i32 : i32
    %1 = arith.extui %0 : i1 to i32
    %c0_i32_0 = arith.constant 0 : i32
    %2 = arith.cmpi ne, %1, %c0_i32_0 : i32
    scf.if %2 {
      %cst_20 = arith.constant 0.000000e+00 : f32
      %32 = vector.broadcast %cst_20 : f32 to vector<1x1xf32>
      %c0_21 = arith.constant 0 : index
      %c0_22 = arith.constant 0 : index
      %33 = vector.load %arg5[%c0_21, %c0_22] : memref<1x1xf32, #tpu.memory_space<vmem>>, vector<1x1xf32>
      tpu.vector_store %arg5[%c0_21, %c0_22], %32 {strides = array<i32>} : memref<1x1xf32, #tpu.memory_space<vmem>>, vector<1x1xf32>,
      %cst_23 = arith.constant 0.000000e+00 : f32
      %34 = vector.broadcast %cst_23 : f32 to vector<1x1xf32>
      %c0_24 = arith.constant 0 : index
      %c0_25 = arith.constant 0 : index
      %35 = vector.load %arg6[%c0_24, %c0_25] : memref<1x1xf32, #tpu.memory_space<vmem>>, vector<1x1xf32>
      tpu.vector_store %arg6[%c0_24, %c0_25], %34 {strides = array<i32>} : memref<1x1xf32, #tpu.memory_space<vmem>>, vector<1x1xf32>,
    } else {
    }
    %c0 = arith.constant 0 : index
    %c0_1 = arith.constant 0 : index
    %c0_2 = arith.constant 0 : index
    %c0_3 = arith.constant 0 : index
    %3 = vector.load %arg2[%c0, %c0_1, %c0_2, %c0_3] : memref<1x1x8x128xf32, #tpu.memory_space<vmem>>, vector<1x1x8x128xf32>
    %4 = vector.shape_cast %3 : vector<1x1x8x128xf32> to vector<8x128xf32>
    %c0_4 = arith.constant 0 : index
    %c0_5 = arith.constant 0 : index
    %c0_6 = arith.constant 0 : index
    %c0_7 = arith.constant 0 : index
    %5 = vector.load %arg3[%c0_4, %c0_5, %c0_6, %c0_7] : memref<1x1x8x128xf32, #tpu.memory_space<vmem>>, vector<1x1x8x128xf32>
    %6 = vector.shape_cast %5 : vector<1x1x8x128xf32> to vector<8x128xf32>
    %cst = arith.constant 5.000000e-01 : f32
    %7 = vector.broadcast %cst : f32 to vector<8x128xf32>
    %8 = arith.cmpf ogt, %4, %7 : vector<8x128xf32>
    %9 = arith.extui %8 : vector<8x128xi1> to vector<8x128xi32>
    %10 = arith.sitofp %9 : vector<8x128xi32> to vector<8x128xf32>
    %c0_8 = arith.constant 0 : index
    %c0_9 = arith.constant 0 : index
    %11 = vector.load %arg5[%c0_8, %c0_9] : memref<1x1xf32, #tpu.memory_space<vmem>>, vector<1x1xf32>
    %12 = arith.mulf %10, %6 : vector<8x128xf32>
    %13 = vector.shape_cast %12 : vector<8x128xf32> to vector<1x8x128xf32>
    %cst_10 = arith.constant dense<0.000000e+00> : vector<1xf32>
    %14 = vector.multi_reduction <add>, %13, %cst_10 [1, 2] : vector<1x8x128xf32> to vector<1xf32>
    %15 = vector.shape_cast %14 : vector<1xf32> to vector<1x1x1xf32>
    %16 = vector.extract %15[0, 0, 0] : f32 from vector<1x1x1xf32>
    %17 = vector.broadcast %16 : f32 to vector<1x1xf32>
    %18 = arith.addf %11, %17 : vector<1x1xf32>
    %c0_11 = arith.constant 0 : index
    %c0_12 = arith.constant 0 : index
    %19 = vector.load %arg5[%c0_11, %c0_12] : memref<1x1xf32, #tpu.memory_space<vmem>>, vector<1x1xf32>
    tpu.vector_store %arg5[%c0_11, %c0_12], %18 {strides = array<i32>} : memref<1x1xf32, #tpu.memory_space<vmem>>, vector<1x1xf32>,
    %c0_13 = arith.constant 0 : index
    %c0_14 = arith.constant 0 : index
    %20 = vector.load %arg6[%c0_13, %c0_14] : memref<1x1xf32, #tpu.memory_space<vmem>>, vector<1x1xf32>
    %21 = arith.addf %10, %6 : vector<8x128xf32>
    %22 = vector.shape_cast %21 : vector<8x128xf32> to vector<1x8x128xf32>
    %cst_15 = arith.constant dense<0.000000e+00> : vector<1xf32>
    %23 = vector.multi_reduction <add>, %22, %cst_15 [1, 2] : vector<1x8x128xf32> to vector<1xf32>
    %24 = vector.shape_cast %23 : vector<1xf32> to vector<1x1x1xf32>
    %25 = vector.extract %24[0, 0, 0] : f32 from vector<1x1x1xf32>
    %26 = vector.broadcast %25 : f32 to vector<1x1xf32>
    %27 = arith.addf %20, %26 : vector<1x1xf32>
    %c0_16 = arith.constant 0 : index
    %c0_17 = arith.constant 0 : index
    %28 = vector.load %arg6[%c0_16, %c0_17] : memref<1x1xf32, #tpu.memory_space<vmem>>, vector<1x1xf32>
    tpu.vector_store %arg6[%c0_16, %c0_17], %27 {strides = array<i32>} : memref<1x1xf32, #tpu.memory_space<vmem>>, vector<1x1xf32>,
    %c0_i32_18 = arith.constant 0 : i32
    %29 = arith.cmpi eq, %arg1, %c0_i32_18 : i32
    %30 = arith.extui %29 : i1 to i32
    %c0_i32_19 = arith.constant 0 : i32
    %31 = arith.cmpi ne, %30, %c0_i32_19 : i32
    scf.if %31 {
      %c0_20 = arith.constant 0 : index
      %c0_21 = arith.constant 0 : index
      %32 = vector.load %arg5[%c0_20, %c0_21] : memref<1x1xf32, #tpu.memory_space<vmem>>, vector<1x1xf32>
      %c0_22 = arith.constant 0 : index
      %c0_23 = arith.constant 0 : index
      %33 = vector.load %arg6[%c0_22, %c0_23] : memref<1x1xf32, #tpu.memory_space<vmem>>, vector<1x1xf32>
      %34 = arith.subf %33, %32 : vector<1x1xf32>
      %cst_24 = arith.constant 1.000000e+00 : f32
      %35 = vector.broadcast %cst_24 : f32 to vector<1x1xf32>
      %36 = arith.addf %32, %35 : vector<1x1xf32>
      %cst_25 = arith.constant 1.000000e+00 : f32
      %37 = vector.broadcast %cst_25 : f32 to vector<1x1xf32>
      %38 = arith.addf %34, %37 : vector<1x1xf32>
      %39 = arith.divf %36, %38 : vector<1x1xf32>
      %40 = vector.shape_cast %39 : vector<1x1xf32> to vector<1x1x1xf32>
      %41 = vector.broadcast %40 : vector<1x1x1xf32> to vector<1x8x128xf32>
      %c0_26 = arith.constant 0 : index
      %c0_27 = arith.constant 0 : index
      %c0_28 = arith.constant 0 : index
      %42 = vector.load %arg4[%c0_26, %c0_27, %c0_28] : memref<1x8x128xf32, #tpu.memory_space<vmem>>, vector<1x8x128xf32>
      tpu.vector_store %arg4[%c0_26, %c0_27, %c0_28], %41 {strides = array<i32>} : memref<1x8x128xf32, #tpu.memory_space<vmem>>, vector<1x8x128xf32>,
    } else {
    }
    return
  }
  func.func @transform_0(%arg0: i32, %arg1: i32) -> (i32, i32, i32, i32) {
    %c0_i32 = arith.constant 0 : i32
    %c0_i32_0 = arith.constant 0 : i32
    %c0_i32_1 = arith.constant 0 : i32
    return %arg0, %c0_i32, %arg1, %c0_i32_0 : i32, i32, i32, i32
  }
  func.func @transform_1(%arg0: i32, %arg1: i32) -> (i32, i32, i32, i32) {
    %c0_i32 = arith.constant 0 : i32
    %c0_i32_0 = arith.constant 0 : i32
    %c0_i32_1 = arith.constant 0 : i32
    return %arg0, %c0_i32, %arg1, %c0_i32_0 : i32, i32, i32, i32
  }
  func.func @transform_2(%arg0: i32, %arg1: i32) -> (i32, i32, i32) {
    %c0_i32 = arith.constant 0 : i32
    %c0_i32_0 = arith.constant 0 : i32
    %c0_i32_1 = arith.constant 0 : i32
    return %arg0, %c0_i32, %c0_i32_0 : i32, i32, i32
  }
}

</mosaic_0001>

<llo_original>
// kernel: tpu_custom_call.1
$region0: #{tpu_custom_call.1}
  #allocation0 [shape = 'u32[]', space=smem, size = 0x4, offset = 0x4, fixed_abs, tag = 'smem constant byte address 0x4 - core index']
  #allocation1 [shape = 'u32[72,128]{1,0:T(1,128)}', space=vmem, size = 0x9000, scoped, tag = 'internal scratch']
  #allocation2 [shape = 'f32[1,1]{1,0:T(1,128)}', space=vmem, size = 0x200, scoped, tag = 'scratch operand']
  #allocation3 [shape = 'f32[1,1]{1,0:T(1,128)}', space=vmem, size = 0x200, scoped, tag = 'scratch operand']
  %s0 = inlined_call_operand.hbm [shape: f32[2,1,8,128], index: 0, kind: input, shape index: {}]
  %s1 = inlined_call_operand.hbm [shape: f32[2,1,8,128], index: 1, kind: input, shape index: {}]
  %s2 = inlined_call_operand.hbm [shape: f32[2,8,128], index: 2, kind: output, shape index: {}]
  %s3 = sld [smem:[#allocation0]]
  $region57: #{tpu_custom_call.1} parent=0
    _
  %s5 = ssub.s32 1, %s3
  %s6 = scalar_select 0, %s5, %s3
  $region1: #{tpu_custom_call.1} parent=0
    #allocation4 [shape = 'u8[8192]{0}', space=vmem, size = 0x2000, scoped, tag = 'input window, operand 0']
    #allocation5 [shape = 's32[2]{0}', space=sflag, size = 0x8, scoped, tag = 'scoped memory for tpu_custom_call.1']
    #allocation6 [shape = 's32[2]{0}', space=sflag, size = 0x8, scoped, tag = 'scoped memory for tpu_custom_call.1']
    #allocation7 [shape = 'u8[8192]{0}', space=vmem, size = 0x2000, scoped, tag = 'input window, operand 1']
    #allocation8 [shape = 's32[2]{0}', space=sflag, size = 0x8, scoped, tag = 'scoped memory for tpu_custom_call.1']
    #allocation9 [shape = 'u8[8192]{0}', space=vmem, size = 0x2000, scoped, tag = 'output window, operand 0']
    %7 = vsyncpa [#allocation5], 0
    %s8 = scalar_lea.sflag [#allocation5], 1
    %9 = vsyncpa %s8, 0
    %10 = vsyncpa [#allocation8], 0
    %s11 = scalar_lea.sflag [#allocation8], 1
    %12 = vsyncpa %s11, 0
    %13 = vsyncpa [#allocation6], 0
    %s14 = scalar_lea.sflag [#allocation6], 1
    %15 = vsyncpa %s14, 0
    loop: start=0, step=1, limit=4
    $region2: #{tpu_custom_call.1} parent=1 // loop_pre_header
      _
    $region3: #{tpu_custom_call.1} parent=1 // loop_header
      %s17 = sphi 0, %s21
      %p18 = scmp.ge.s32.totalorder %s17, 4
      %s24 = sphi 0, %s36
      %s25 = sphi 0, %s32
      %s26 = sphi 0, %s24
      %s27 = sphi 0, %s25
      %s28 = sphi 0, %s26
      %s29 = sphi 0, %s27
      %s41 = sphi 0, %s43
      %s44 = sphi 0, %s41
      %s45 = sphi 0, %s44
      %s61 = sphi 0, %s45
      %s69 = sphi 0, %s71
      %s72 = sphi 0, %s69
      %s73 = sphi 0, %s72
      %s89 = sphi 0, %s73
      %s95 = sphi 0, %s97
      %s98 = sphi 0, %s95
      %s99 = sphi 0, %s98
      %s115 = sphi 0, %s99
    $region4: #{tpu_custom_call.1} parent=1 // loop_header_branch
      %20 = sbr.rel (%p18) target = $region8
    $region5: #{tpu_custom_call.1} parent=1 // loop_body
      %s22 = ssub.s32 %s17, 1
      %s23 = ssub.s32 %s17, 2
      %s30 = sadd.s32 1, %s25
      %p31 = scmp.ge.s32.totalorder %s30, 1
      %s32 = scalar_select %p31, 0, %s30
      %s33 = sadd.s32 1, %s24
      %s34 = scalar_select %p31, %s33, %s24
      %p35 = scmp.ge.s32.totalorder %s34, 2
      %s36 = scalar_select %p35, 0, %s34
      %s37 = ssub.s32 %s24, %s36
      %s38 = ssub.s32 %s25, %s32
      %s39 = sor.u32 %s37, %s38
      %p40 = scmp.eq.s32.totalorder %s39, 0
      %s42 = sadd.s32 %s41, 1
      %s43 = scalar_select %p40, %s41, %s42
      %p46 = pneg %p40
      %p47 = scmp.eq.s32.totalorder %s17, 1
      %p48 = por %p46, %p47
      %p49 = scmp.ne.s32.totalorder %s41, %s44
      %p50 = scmp.eq.s32.totalorder %s17, 0
      %p51 = por %p49, %p50
      %p52 = scmp.ne.s32.totalorder %s41, %s44
      %p53 = scmp.eq.s32.totalorder %s22, 1
      %p54 = por %p52, %p53
      %p55 = scmp.ne.s32.totalorder %s44, %s45
      %p56 = scmp.eq.s32.totalorder %s22, 0
      %p57 = por %p55, %p56
      %p58 = scmp.ne.s32.totalorder %s44, %s45
      %p59 = scmp.eq.s32.totalorder %s23, 1
      %p60 = por %p58, %p59
      %p62 = scmp.ne.s32.totalorder %s45, %s61
      %p63 = scmp.eq.s32.totalorder %s23, 0
      %p64 = por %p62, %p63
      %s65 = ssub.s32 %s24, %s36
      %s66 = ssub.s32 %s25, %s32
      %s67 = sor.u32 %s65, %s66
      %p68 = scmp.eq.s32.totalorder %s67, 0
      %s70 = sadd.s32 %s69, 1
      %s71 = scalar_select %p68, %s69, %s70
      %p74 = pneg %p68
      %p75 = scmp.eq.s32.totalorder %s17, 1
      %p76 = por %p74, %p75
      %p77 = scmp.ne.s32.totalorder %s69, %s72
      %p78 = scmp.eq.s32.totalorder %s17, 0
      %p79 = por %p77, %p78
      %p80 = scmp.ne.s32.totalorder %s69, %s72
      %p81 = scmp.eq.s32.totalorder %s22, 1
      %p82 = por %p80, %p81
      %p83 = scmp.ne.s32.totalorder %s72, %s73
      %p84 = scmp.eq.s32.totalorder %s22, 0
      %p85 = por %p83, %p84
      %p86 = scmp.ne.s32.totalorder %s72, %s73
      %p87 = scmp.eq.s32.totalorder %s23, 1
      %p88 = por %p86, %p87
      %p90 = scmp.ne.s32.totalorder %s73, %s89
      %p91 = scmp.eq.s32.totalorder %s23, 0
      %p92 = por %p90, %p91
      %s93 = ssub.s32 %s24, %s36
      %p94 = scmp.eq.s32.totalorder %s93, 0
      %s96 = sadd.s32 %s95, 1
      %s97 = scalar_select %p94, %s95, %s96
      %p100 = pneg %p94
      %p101 = scmp.eq.s32.totalorder %s17, 1
      %p102 = por %p100, %p101
      %p103 = scmp.ne.s32.totalorder %s95, %s98
      %p104 = scmp.eq.s32.totalorder %s17, 0
      %p105 = por %p103, %p104
      %p106 = scmp.ne.s32.totalorder %s95, %s98
      %p107 = scmp.eq.s32.totalorder %s22, 1
      %p108 = por %p106, %p107
      %p109 = scmp.ne.s32.totalorder %s98, %s99
      %p110 = scmp.eq.s32.totalorder %s22, 0
      %p111 = por %p109, %p110
      %p112 = scmp.ne.s32.totalorder %s98, %s99
      %p113 = scmp.eq.s32.totalorder %s23, 1
      %p114 = por %p112, %p113
      %p116 = scmp.ne.s32.totalorder %s99, %s115
      %p117 = scmp.eq.s32.totalorder %s23, 0
      %p118 = por %p116, %p117
      %p119 = scmp.le.s32.totalorder 1, %s17
      %p120 = scmp.lt.s32.totalorder %s17, 3
      %p121 = pnand %p119, %p120
      %p122 = pneg %p121
      // Predicated region
      $region9: #{tpu_custom_call.1} parent=5 // pred_check
        _
      $region10: #{tpu_custom_call.1} parent=5 // pred_check_branch
        %124 = sbr.rel (%p121) target = $region12
      $region11: #{tpu_custom_call.1} parent=5 // pred_region
        %s125 = ssub.s32 %s17, 1
      $region12: #{tpu_custom_call.1} parent=5 // pred_fallthru
        _
      %p126 = scmp.lt.s32.totalorder %s17, 2
      // Predicated region
      $region13: #{tpu_custom_call.1} parent=5 // pred_check
        %p127 = pneg %p126
      $region14: #{tpu_custom_call.1} parent=5 // pred_check_branch
        %129 = sbr.rel (%p127) target = $region16
      $region15: #{tpu_custom_call.1} parent=5 // pred_region
        // Predicated region
        $region17: #{tpu_custom_call.1} parent=15 // pred_check
          %p130 = pneg %p51
        $region18: #{tpu_custom_call.1} parent=15 // pred_check_branch
          %132 = sbr.rel (%p130) target = $region20
        $region19: #{tpu_custom_call.1} parent=15 // pred_region
          %s133 = sand.u32 %s41, 1
          %s134 = scalar_lea.sflag [#allocation5], %s133
          %s135 = sand.u32 %s41, 1
          %s136 = smul.addr %s135, 8
          %s137 = scalar_lea.vmem [#allocation4], %s136
          %139 = vsyncadd %s134, 0
          %s140 = sadd.s32 %s25, %s24
          %s141 = smul.addr %s140, 8
          %s142 = scalar_lea.hbm %s0, %s141
          %s144 = sshll.u32 %s142, 4
          %s145 = int_to_ptr.hbm [resolvable:$true] %s144
          %s146 = sshll.u32 %s137, 4
          %s147 = int_to_ptr.vmem [resolvable:$true] %s146
          %149 = dma.hbm_to_vmem [thread:$0]  %s145, 128, %s147, %s134
        $region20: #{tpu_custom_call.1} parent=15 // pred_fallthru
          _
        // Predicated region
        $region21: #{tpu_custom_call.1} parent=15 // pred_check
          %p150 = pneg %p79
        $region22: #{tpu_custom_call.1} parent=15 // pred_check_branch
          %152 = sbr.rel (%p150) target = $region24
        $region23: #{tpu_custom_call.1} parent=15 // pred_region
          %s153 = sand.u32 %s69, 1
          %s154 = scalar_lea.sflag [#allocation8], %s153
          %s155 = sand.u32 %s69, 1
          %s156 = smul.addr %s155, 8
          %s157 = scalar_lea.vmem [#allocation7], %s156
          %159 = vsyncadd %s154, 0
          %s160 = sadd.s32 %s25, %s24
          %s161 = smul.addr %s160, 8
          %s162 = scalar_lea.hbm %s1, %s161
          %s164 = sshll.u32 %s162, 4
          %s165 = int_to_ptr.hbm [resolvable:$true] %s164
          %s166 = sshll.u32 %s157, 4
          %s167 = int_to_ptr.vmem [resolvable:$true] %s166
          %169 = dma.hbm_to_vmem [thread:$0]  %s165, 128, %s167, %s154
        $region24: #{tpu_custom_call.1} parent=15 // pred_fallthru
          _
      $region16: #{tpu_custom_call.1} parent=5 // pred_fallthru
        _
      %p170 = scmp.le.s32.totalorder 1, %s17
      %p171 = scmp.lt.s32.totalorder %s17, 3
      %p172 = pnand %p170, %p171
      %p173 = pneg %p172
      // Predicated region
      $region25: #{tpu_custom_call.1} parent=5 // pred_check
        _
      $region26: #{tpu_custom_call.1} parent=5 // pred_check_branch
        %175 = sbr.rel (%p172) target = $region28
      $region27: #{tpu_custom_call.1} parent=5 // pred_region
        %s176 = ssub.s32 %s17, 1
        %s177 = sand.u32 %s44, 1
        %s178 = scalar_lea.sflag [#allocation5], %s177
        %s179 = sand.u32 %s44, 1
        %s180 = smul.addr %s179, 8
        %s181 = scalar_lea.vmem [#allocation4], %s180
        // Predicated region
        $region29: #{tpu_custom_call.1} parent=27 // pred_check
          %p182 = pneg %p57
        $region30: #{tpu_custom_call.1} parent=27 // pred_check_branch
          %184 = sbr.rel (%p182) target = $region32
        $region31: #{tpu_custom_call.1} parent=27 // pred_region
          %186 = dma.done %s178, 128
        $region32: #{tpu_custom_call.1} parent=27 // pred_fallthru
          _
        %s187 = sand.u32 %s72, 1
        %s188 = scalar_lea.sflag [#allocation8], %s187
        %s189 = sand.u32 %s72, 1
        %s190 = smul.addr %s189, 8
        %s191 = scalar_lea.vmem [#allocation7], %s190
        // Predicated region
        $region33: #{tpu_custom_call.1} parent=27 // pred_check
          %p192 = pneg %p85
        $region34: #{tpu_custom_call.1} parent=27 // pred_check_branch
          %194 = sbr.rel (%p192) target = $region36
        $region35: #{tpu_custom_call.1} parent=27 // pred_region
          %196 = dma.done %s188, 128
        $region36: #{tpu_custom_call.1} parent=27 // pred_fallthru
          _
        %s197 = sand.u32 %s44, 1
        %s198 = scalar_lea.sflag [#allocation5], %s197
        %s199 = sand.u32 %s44, 1
        %s200 = smul.addr %s199, 8
        %s201 = scalar_lea.vmem [#allocation4], %s200
        %p202 = pneg %p57
        %p203 = pneg %p54
        %s204 = sand.u32 %s72, 1
        %s205 = scalar_lea.sflag [#allocation8], %s204
        %s206 = sand.u32 %s72, 1
        %s207 = smul.addr %s206, 8
        %s208 = scalar_lea.vmem [#allocation7], %s207
        %p209 = pneg %p85
        %p210 = pneg %p82
        %p211 = pneg %p111
        %p212 = pneg %p108
        %s213 = sand.u32 %s98, 1
        %s214 = scalar_lea.sflag [#allocation6], %s213
        %s215 = sand.u32 %s98, 1
        %s216 = smul.addr %s215, 8
        %s217 = scalar_lea.vmem [#allocation9], %s216
        %p218 = scmp.eq.s32.totalorder %s27, 0
        // Predicated region
        $region37: #{tpu_custom_call.1} parent=27 // pred_check
          %p219 = pneg %p218
        $region38: #{tpu_custom_call.1} parent=27 // pred_check_branch
          %221 = sbr.rel (%p219) target = $region40
        $region39: #{tpu_custom_call.1} parent=27 // pred_region
          %vm222 = vcmask 0
          %223 = vst.msk [vmem:[#allocation2] sm:$0x1] %vm222, 0.0
          %224 = vst.msk [vmem:[#allocation3] sm:$0x1] %vm222, 0.0
        $region40: #{tpu_custom_call.1} parent=27 // pred_fallthru
          _
        %v225 = vld [vmem:[%s181] sm:$0xff]
        %v226 = vld [vmem:[%s191] sm:$0xff]
        %vm227 = vcmp.gt.f32.partialorder %v225, 0.5
        %v228 = vsel %vm227, 1, 0
        %v229 = vcvt.s32.f32 %v228
        %v230 = vld [vmem:[#allocation2] sm:$0x1]
        %v231 = vmul.f32 %v229, %v226
        %232 = vadd.xlane.f32.xlu0 %v231
        %v233 = vpop.xlane.xlu0 %232
        %v234 = vrot.slane %v233, 4
        %v235 = vadd.f32 %v233, %v234
        %v236 = vrot.slane %v235, 2
        %v237 = vadd.f32 %v235, %v236
        %v238 = vrot.slane %v237, 1
        %v239 = vadd.f32 %v237, %v238
        %s240 = vtos %v239
        %v241 = vstv %s240
        %v242 = vadd.f32 %v230, %v241
        %vm243 = vcmask 0
        %244 = vst.msk [vmem:[#allocation2] sm:$0x1] %vm243, %v242
        %v245 = vld [vmem:[#allocation3] sm:$0x1]
        %v246 = vadd.f32 %v229, %v226
        %247 = vadd.xlane.f32.xlu0 %v246
        %v248 = vpop.xlane.xlu0 %247
        %v249 = vrot.slane %v248, 4
        %v250 = vadd.f32 %v248, %v249
        %v251 = vrot.slane %v250, 2
        %v252 = vadd.f32 %v250, %v251
        %v253 = vrot.slane %v252, 1
        %v254 = vadd.f32 %v252, %v253
        %s255 = vtos %v254
        %v256 = vstv %s255
        %v257 = vadd.f32 %v245, %v256
        %258 = vst.msk [vmem:[#allocation3] sm:$0x1] %vm243, %v257
        // Predicated region
        $region41: #{tpu_custom_call.1} parent=27 // pred_check
          %p259 = pneg %p218
        $region42: #{tpu_custom_call.1} parent=27 // pred_check_branch
          %261 = sbr.rel (%p259) target = $region44
        $region43: #{tpu_custom_call.1} parent=27 // pred_region
          %v262 = vld [vmem:[#allocation2] sm:$0x1]
          %v263 = vld [vmem:[#allocation3] sm:$0x1]
          %v264 = vsub.f32 %v263, %v262
          %v265 = vadd.f32 %v262, 1.0
          %v266 = vadd.f32 %v264, 1.0
          %v267 = vrcp.pop %v266
          %v268 = vmul.f32 %v266, %v267
          %v269 = vsub.f32 1.0, %v268
          %v270 = vmul.f32 %v267, %v269
          %v271 = vadd.f32 %v267, %v270
          %vm272 = vweird.f32 %v266
          %vm273 = vweird.f32 %v267
          %vm274 = vmor %vm272, %vm273
          %v275 = vsel %vm274, %v267, %v271
          %v276 = vand.u32 2147483647, %v266
          %vm277 = vcmp.eq.f32.partialorder %v276, 8.507059e+37
          %v278 = vand.u32 %v266, 2147483648
          %v279 = vor.u32 1.1754944e-38, %v278
          %v280 = vsel %vm277, %v279, %v275
          %v281 = vmul.f32 %v265, %v280
          %v283 = vperm.slane %v281, 0
          %284 = vset.pattern.permute.xlu0 0
          %285 = vperm.xlu0 %284, %v283
          %v286 = vpop.permute.xlu0 %285
          %288 = vst [vmem:[%s217] sm:$0xff] %v286
        $region44: #{tpu_custom_call.1} parent=27 // pred_fallthru
          _
        %s289 = sand.u32 %s98, 1
        %s290 = scalar_lea.sflag [#allocation6], %s289
        %s291 = sand.u32 %s98, 1
        %s292 = smul.addr %s291, 8
        %s293 = scalar_lea.vmem [#allocation9], %s292
        // Predicated region
        $region45: #{tpu_custom_call.1} parent=27 // pred_check
          %p294 = pneg %p108
        $region46: #{tpu_custom_call.1} parent=27 // pred_check_branch
          %296 = sbr.rel (%p294) target = $region48
        $region47: #{tpu_custom_call.1} parent=27 // pred_region
          %298 = vsyncadd %s290, 0
          %s299 = smul.addr %s26, 8
          %s300 = scalar_lea.hbm %s2, %s299
          %s302 = sshll.u32 %s293, 4
          %s303 = int_to_ptr.vmem [resolvable:$true] %s302
          %s304 = sshll.u32 %s300, 4
          %s305 = int_to_ptr.hbm [resolvable:$true] %s304
          %307 = dma.vmem_to_hbm [thread:$0]  %s303, 128, %s305, %s290
        $region48: #{tpu_custom_call.1} parent=27 // pred_fallthru
          _
      $region28: #{tpu_custom_call.1} parent=5 // pred_fallthru
        _
      %p308 = scmp.le.s32.totalorder 2, %s17
      // Predicated region
      $region49: #{tpu_custom_call.1} parent=5 // pred_check
        %p309 = pneg %p308
      $region50: #{tpu_custom_call.1} parent=5 // pred_check_branch
        %311 = sbr.rel (%p309) target = $region52
      $region51: #{tpu_custom_call.1} parent=5 // pred_region
        %s312 = ssub.s32 %s17, 2
        // Predicated region
        $region53: #{tpu_custom_call.1} parent=51 // pred_check
          %p313 = pneg %p114
        $region54: #{tpu_custom_call.1} parent=51 // pred_check_branch
          %315 = sbr.rel (%p313) target = $region56
        $region55: #{tpu_custom_call.1} parent=51 // pred_region
          %s316 = sand.u32 %s99, 1
          %s317 = scalar_lea.sflag [#allocation6], %s316
          %s318 = sand.u32 %s99, 1
          %s319 = smul.addr %s318, 8
          %s320 = scalar_lea.vmem [#allocation9], %s319
          %322 = dma.done %s317, 128
        $region56: #{tpu_custom_call.1} parent=51 // pred_fallthru
          _
      $region52: #{tpu_custom_call.1} parent=5 // pred_fallthru
        _
    $region6: #{tpu_custom_call.1} parent=1 // loop_footer
      %s21 = sadd.s32 1, %s17
    $region7: #{tpu_custom_call.1} parent=1 // loop_footer_branch
      %16 = sbr.rel target = $region3
    $region8: #{tpu_custom_call.1} parent=1 // loop_exit
      _
    %323 = vsyncpa [#allocation5], 1
    %s324 = scalar_lea.sflag [#allocation5], 1
    %325 = vsyncpa %s324, 1
    %326 = vsyncpa [#allocation8], 1
    %s327 = scalar_lea.sflag [#allocation8], 1
    %328 = vsyncpa %s327, 1
    %329 = vsyncpa [#allocation6], 1
    %s330 = scalar_lea.sflag [#allocation6], 1
    %331 = vsyncpa %s330, 1

</llo_original>
